<compile_context>
chip_gen: v7x
topology: tpu7x:2x2x1
jax: 0.10.0
libtpu: 0.0.40
codegen_flags: <defaults>
</compile_context>

<pallas_src>
import functools

import jax
import jax.numpy as jnp
from jax import lax
from jax.experimental import pallas as pl
from jax.experimental.pallas import tpu as pltpu

TEMPERATURE = 0.1
INFINITY_PROXY = 10000.0


def _detcon_tile_kernel(local_negatives,
                        p1_ref, p2_ref, kt_ref,
                        qa_lab_ref, qa_self_ref, qb_lab_ref, qb_self_ref,
                        qbid_ref, c1a_ref, wa_ref, c1b_ref, wb_ref,
                        kidx_ref, kbid_ref,
                        out_ref):
    """One row tile: (TM, D) queries of both views vs all 2M keys."""
    inv_temp = jnp.float32(1.0 / TEMPERATURE)

    def l2norm_bf16(x):
        ss = jnp.sum(x * x, axis=-1, keepdims=True)
        # rsqrt goes to the EUP (free slot); matches clamp_min(1e-12) on the norm.
        return (x * lax.rsqrt(jnp.maximum(ss, 1e-24))).astype(jnp.bfloat16)

    kt = kt_ref[...]        # (D, 2M) bf16, [target2 | target1], normalized in wrapper
    kidx = kidx_ref[...]    # (1, 2M) int32 offset indices (batch + view bit folded in)
    kbid = kbid_ref[...]    # (1, 2M) int32 batch ids (only used if not local_negatives)

    def view_ce(p_ref, q_lab_ref, q_self_ref, c1_ref, w_ref):
        p = l2norm_bf16(p_ref[...])                                 # (TM, D) bf16
        l = jnp.dot(p, kt, preferred_element_type=jnp.float32) * inv_temp  # (TM, 2M)

        q_lab = q_lab_ref[...]                                      # (TM, 1) int32
        q_self = q_self_ref[...]
        lab = q_lab == kidx          # labels*same_obj  (hits only the labelled half)
        self_m = q_self == kidx      # self-view positives (hits only the other half)

        # Remove self-view positives ('aa'/'bb' halves) from the logits.
        l = jnp.where(self_m, l - INFINITY_PROXY, l)
        if not local_negatives:
            # labels*(1 - same_obj): same image but different object, both halves.
            neg_m = jnp.logical_and(qbid_ref[...] == kbid,
                                    jnp.logical_not(jnp.logical_or(lab, self_m)))
            l = jnp.where(neg_m, l - INFINITY_PROXY, l)

        # Joint log-sum-exp over the concatenated [labelled, self] logits.
        m = jnp.max(l, axis=-1, keepdims=True)
        s = jnp.sum(jnp.exp(l - m), axis=-1, keepdims=True)
        lse = m + jnp.log(s)
        numer = jnp.sum(jnp.where(lab, l, 0.0), axis=-1, keepdims=True)
        # ce = -w * sum(labels/max(num_pos,1) * (logits - lse))
        #    =  w * lse - (w / max(num_pos, 1)) * numer     (coeffs precomputed)
        return w_ref[...] * lse - c1_ref[...] * numer               # (TM, 1)

    ce = (view_ce(p1_ref, qa_lab_ref, qa_self_ref, c1a_ref, wa_ref) +
          view_ce(p2_ref, qb_lab_ref, qb_self_ref, c1b_ref, wb_ref))

    # Lane-dense partial-sum output block for this tile.
    out_ref[...] = jnp.full(out_ref.shape, jnp.sum(ce), jnp.float32)


def detcon_loss(pred1, pred2, target1, target2,
                pind1, pind2, tind1, tind2, local_negatives=True):
    b, n, d = pred1.shape
    M = b * n
    M2 = 2 * M
    f32, i32 = jnp.float32, jnp.int32

    def l2norm(x):
        ss = jnp.sum(x * x, axis=-1, keepdims=True)
        return x * lax.rsqrt(jnp.maximum(ss, 1e-24))

    p1 = pred1.reshape(M, d).astype(f32)
    p2 = pred2.reshape(M, d).astype(f32)
    # Keys are resident across all row tiles: normalize once, cast to bf16 and
    # lay them out as a single (D, 2M) matrix [target2 | target1] so both the
    # 'ab/aa' and 'ba/bb' logit rows come from one wide matmul each.
    t1 = l2norm(target1.reshape(M, d).astype(f32)).astype(jnp.bfloat16)
    t2 = l2norm(target2.reshape(M, d).astype(f32)).astype(jnp.bfloat16)
    kt = jnp.concatenate([t2, t1], axis=0).T                        # (d, 2M) bf16

    pi1 = pind1.reshape(M).astype(i32)
    pi2 = pind2.reshape(M).astype(i32)
    ti1 = tind1.reshape(M).astype(i32)
    ti2 = tind2.reshape(M).astype(i32)
    bid = jnp.repeat(jnp.arange(b, dtype=i32), n)

    kmax = jnp.maximum(jnp.maximum(jnp.max(pi1), jnp.max(pi2)),
                       jnp.maximum(jnp.max(ti1), jnp.max(ti2))) + 1

    # Fold (batch id, key-view bit) into the mask index so every mask in the
    # kernel is a single int32 compare.
    def off(idx, view_bit):
        return (2 * bid + view_bit) * kmax + idx

    kidx = jnp.concatenate([off(ti2, 0), off(ti1, 1)]).reshape(1, M2)
    kbid = jnp.concatenate([bid, bid]).reshape(1, M2)

    qa_lab = off(pi1, 0)     # view A labels live in the target2 half ('ab')
    qa_self = off(pi1, 1)    # view A self-removal hits the target1 half ('aa')
    qb_lab = off(pi2, 1)     # view B labels live in the target1 half ('ba')
    qb_self = off(pi2, 0)    # view B self-removal hits the target2 half ('bb')

    # Per-row CE coefficients (num_pos / obj_area / weight) — O(b*n^2) because
    # labels restrict everything to the same image.
    def row_coeffs(p_idx, t_idx):
        p_b = p_idx.reshape(b, n)
        t_b = t_idx.reshape(b, n)
        num_pos = jnp.sum((p_b[:, :, None] == t_b[:, None, :]).astype(f32), axis=-1)
        obj_area = jnp.sum((p_b[:, :, None] == p_b[:, None, :]).astype(f32), axis=-1)
        w = (num_pos > 0.001).astype(f32) / obj_area
        c1 = w / jnp.maximum(num_pos, 1.0)
        return w.reshape(M), c1.reshape(M)

    wa, c1a = row_coeffs(pi1, ti2)
    wb, c1b = row_coeffs(pi2, ti1)

    # Row tile size: biggest multiple of 8 whose working set fits the budget.
    def pick_tm():
        budget = 48 * 1024 * 1024
        keys_bytes = 2 * (d * M2 * 2)                 # resident bf16 keys (+ buffer slack)
        for cand in (512, 256, 128, 64, 32, 16, 8):
            tmp = 6 * cand * M2 * 4                   # live (TM, 2M) f32 temporaries
            preds = 2 * 2 * cand * d * 4              # double-buffered f32 pred tiles
            if keys_bytes + tmp + preds <= budget:
                return cand
        return 8

    tm = min(pick_tm(), -(-M // 8) * 8)
    num_tiles = -(-M // tm)
    mpad = num_tiles * tm
    pad = mpad - M

    def pad_feat(x):
        return jnp.pad(x, ((0, pad), (0, 0)))

    p1p, p2p = pad_feat(p1), pad_feat(p2)

    sent = jnp.full((pad,), -(2 ** 30), dtype=i32)    # padded rows: no matches, zero weight
    zpad = jnp.zeros((pad,), dtype=f32)

    def col_i(x):
        return jnp.concatenate([x, sent]).reshape(mpad, 1)

    def col_f(x):
        return jnp.concatenate([x, zpad]).reshape(mpad, 1)

    qa_lab_c, qa_self_c = col_i(qa_lab), col_i(qa_self)
    qb_lab_c, qb_self_c = col_i(qb_lab), col_i(qb_self)
    qbid_c = col_i(bid)
    c1a_c, wa_c, c1b_c, wb_c = col_f(c1a), col_f(wa), col_f(c1b), col_f(wb)

    # Per-tile working set: resident bf16 keys (+buffer), f32 pred tiles
    # (+double buffer), ~8 live (TM, 2M) f32 temporaries; cap at 64 MiB (v7x).
    est = 2 * d * M2 * 2 + 2 * 2 * tm * d * 4 + 8 * tm * M2 * 4 + (4 << 20)
    vmem_limit = int(min(64 * 1024 * 1024, max(est, 8 * 1024 * 1024)))

    kernel = functools.partial(_detcon_tile_kernel, bool(local_negatives))
    out = pl.pallas_call(
        kernel,
        out_shape=jax.ShapeDtypeStruct((num_tiles, 8, 128), jnp.float32),
        grid=(num_tiles,),
        in_specs=[
            pl.BlockSpec((tm, d), lambda i: (i, 0)),     # pred1 row tile (f32)
            pl.BlockSpec((tm, d), lambda i: (i, 0)),     # pred2 row tile (f32)
            pl.BlockSpec((d, M2), lambda i: (0, 0)),     # resident keys [t2 | t1]^T (bf16)
            pl.BlockSpec((tm, 1), lambda i: (i, 0)),     # view-A label query indices
            pl.BlockSpec((tm, 1), lambda i: (i, 0)),     # view-A self query indices
            pl.BlockSpec((tm, 1), lambda i: (i, 0)),     # view-B label query indices
            pl.BlockSpec((tm, 1), lambda i: (i, 0)),     # view-B self query indices
            pl.BlockSpec((tm, 1), lambda i: (i, 0)),     # query batch id
            pl.BlockSpec((tm, 1), lambda i: (i, 0)),     # c1_a = w_a / max(num_pos_a, 1)
            pl.BlockSpec((tm, 1), lambda i: (i, 0)),     # w_a
            pl.BlockSpec((tm, 1), lambda i: (i, 0)),     # c1_b
            pl.BlockSpec((tm, 1), lambda i: (i, 0)),     # w_b
            pl.BlockSpec((1, M2), lambda i: (0, 0)),     # key offset indices (row)
            pl.BlockSpec((1, M2), lambda i: (0, 0)),     # key batch ids (row)
        ],
        out_specs=pl.BlockSpec((1, 8, 128), lambda i: (i, 0, 0)),
        compiler_params=pltpu.CompilerParams(
            dimension_semantics=("parallel",),
            vmem_limit_bytes=vmem_limit),
    )(p1p, p2p, kt,
      qa_lab_c, qa_self_c, qb_lab_c, qb_self_c, qbid_c,
      c1a_c, wa_c, c1b_c, wb_c,
      kidx, kbid)

    return jnp.sum(out[:, 0, 0]) / M


def detcon_loss_ref(pred1, pred2, target1, target2,
                    pind1, pind2, tind1, tind2, local_negatives=True):
    """Pure-JAX f32 transcription of the PyTorch forward (single-replica path)."""
    b, n, _ = pred1.shape
    inf = INFINITY_PROXY

    def make_same_obj(i0, i1):
        return (i0.reshape(b, n, 1) == i1.reshape(b, 1, n))[:, :, None, :].astype(jnp.float32)

    same = {'aa': make_same_obj(pind1, tind1), 'ab': make_same_obj(pind1, tind2),
            'ba': make_same_obj(pind2, tind1), 'bb': make_same_obj(pind2, tind2)}

    def norm(x):
        dn = jnp.maximum(jnp.linalg.norm(x, axis=-1, keepdims=True), 1e-12)
        return x / dn

    p1, p2, t1, t2 = map(norm, (pred1, pred2, target1, target2))
    labels = jnp.eye(b, dtype=jnp.float32)[:, None, :, None]     # (b,1,b,1)
    logits = {'aa': jnp.einsum('abk,uvk->abuv', p1, t1) / TEMPERATURE,
              'ab': jnp.einsum('abk,uvk->abuv', p1, t2) / TEMPERATURE,
              'ba': jnp.einsum('abk,uvk->abuv', p2, t1) / TEMPERATURE,
              'bb': jnp.einsum('abk,uvk->abuv', p2, t2) / TEMPERATURE}
    lab = {k: labels * same[k] for k in same}
    logits['aa'] = logits['aa'] - inf * labels * same['aa']
    logits['bb'] = logits['bb'] - inf * labels * same['bb']
    lab['aa'] = lab['aa'] * 0.0
    lab['bb'] = lab['bb'] * 0.0
    if not local_negatives:
        for k in ('aa', 'ab', 'ba', 'bb'):
            logits[k] = logits[k] - inf * labels * (1.0 - same[k])
    labels_concat = [jnp.concatenate([lab['ab'], lab['aa']], axis=2).reshape(b, n, -1),
                     jnp.concatenate([lab['ba'], lab['bb']], axis=2).reshape(b, n, -1)]
    num_pos = [jnp.sum(lc, axis=-1, keepdims=True) for lc in labels_concat]
    labels_concat = [lc / jnp.maximum(npos, 1.0) for lc, npos in zip(labels_concat, num_pos)]
    obj_area = [jnp.sum(make_same_obj(pi, pi), axis=(2, 3)) for pi in (pind1, pind2)]
    weights = [(npos[..., 0] > 0.001).astype(jnp.float32) / oa
               for npos, oa in zip(num_pos, obj_area)]
    logits_concat = [jnp.concatenate([logits['ab'], logits['aa']], axis=2).reshape(b, n, -1),
                     jnp.concatenate([logits['ba'], logits['bb']], axis=2).reshape(b, n, -1)]

    def mce(lg, lb, w):
        ce = -w * jnp.sum(lb * jax.nn.log_softmax(lg, axis=-1), axis=-1)
        return jnp.mean(ce)

    return (mce(logits_concat[0], labels_concat[0], weights[0]) +
            mce(logits_concat[1], labels_concat[1], weights[1]))


if __name__ == "__main__":
    key = jax.random.PRNGKey(0)
    b, n, d = 2, 8, 32
    keys = jax.random.split(key, 8)
    pred1 = jax.random.normal(keys[0], (b, n, d), jnp.float32)
    pred2 = jax.random.normal(keys[1], (b, n, d), jnp.float32)
    target1 = jax.random.normal(keys[2], (b, n, d), jnp.float32)
    target2 = jax.random.normal(keys[3], (b, n, d), jnp.float32)
    pind1 = jax.random.randint(keys[4], (b, n), 0, 4, jnp.int32)
    pind2 = jax.random.randint(keys[5], (b, n), 0, 4, jnp.int32)
    tind1 = jax.random.randint(keys[6], (b, n), 0, 4, jnp.int32)
    tind2 = jax.random.randint(keys[7], (b, n), 0, 4, jnp.int32)

    for local_neg in (True, False):
        loss = detcon_loss(pred1, pred2, target1, target2,
                           pind1, pind2, tind1, tind2, local_negatives=local_neg)
        loss = jax.block_until_ready(loss)
        ref = detcon_loss_ref(pred1, pred2, target1, target2,
                              pind1, pind2, tind1, tind2, local_negatives=local_neg)
        ref = float(jax.block_until_ready(ref))
        got = float(loss)
        # bf16 MXU operands (f32 accumulate) give O(1e-3) logit deltas vs the
        # full-f32 reference; 1e-2 relative tolerance covers that comfortably.
        assert abs(got - ref) <= 1e-2 * max(1.0, abs(ref)), (local_neg, got, ref)

    print("KERNEL_OK")
</pallas_src>

<mosaic_0001>
module attributes {stable_mosaic.version = 11 : i64} {
  func.func @_detcon_tile_kernel(%arg0: i32, %arg1: memref<16x32xf32, #tpu.memory_space<vmem>>, %arg2: memref<16x32xf32, #tpu.memory_space<vmem>>, %arg3: memref<32x32xbf16, #tpu.memory_space<vmem>>, %arg4: memref<16x1xi32, #tpu.memory_space<vmem>>, %arg5: memref<16x1xi32, #tpu.memory_space<vmem>>, %arg6: memref<16x1xi32, #tpu.memory_space<vmem>>, %arg7: memref<16x1xi32, #tpu.memory_space<vmem>>, %arg8: memref<16x1xi32, #tpu.memory_space<vmem>>, %arg9: memref<16x1xf32, #tpu.memory_space<vmem>>, %arg10: memref<16x1xf32, #tpu.memory_space<vmem>>, %arg11: memref<16x1xf32, #tpu.memory_space<vmem>>, %arg12: memref<16x1xf32, #tpu.memory_space<vmem>>, %arg13: memref<1x32xi32, #tpu.memory_space<vmem>>, %arg14: memref<1x32xi32, #tpu.memory_space<vmem>>, %arg15: memref<1x8x128xf32, #tpu.memory_space<vmem>>) attributes {dimension_semantics = [#tpu.dimension_semantics<parallel>], iteration_bounds = array<i64: 1>, scalar_prefetch = 0 : i64, scratch_operands = 0 : i64, tpu.core_type = #tpu.core_type<tc>, window_params = [{transform_indices = @transform_0, window_bounds = array<i64: 16, 32>}, {transform_indices = @transform_1, window_bounds = array<i64: 16, 32>}, {pipeline_mode = #tpu.pipeline_mode<synchronous>, transform_indices = @transform_2, window_bounds = array<i64: 32, 32>}, {transform_indices = @transform_3, window_bounds = array<i64: 16, 1>}, {transform_indices = @transform_4, window_bounds = array<i64: 16, 1>}, {transform_indices = @transform_5, window_bounds = array<i64: 16, 1>}, {transform_indices = @transform_6, window_bounds = array<i64: 16, 1>}, {transform_indices = @transform_7, window_bounds = array<i64: 16, 1>}, {transform_indices = @transform_8, window_bounds = array<i64: 16, 1>}, {transform_indices = @transform_9, window_bounds = array<i64: 16, 1>}, {transform_indices = @transform_10, window_bounds = array<i64: 16, 1>}, {transform_indices = @transform_11, window_bounds = array<i64: 16, 1>}, {pipeline_mode = #tpu.pipeline_mode<synchronous>, transform_indices = @transform_12, window_bounds = array<i64: 1, 32>}, {pipeline_mode = #tpu.pipeline_mode<synchronous>, transform_indices = @transform_13, window_bounds = array<i64: 1, 32>}, {transform_indices = @transform_14, window_bounds = array<i64: 1, 8, 128>}]} {
    %c0 = arith.constant 0 : index
    %c0_0 = arith.constant 0 : index
    %0 = vector.load %arg3[%c0, %c0_0] : memref<32x32xbf16, #tpu.memory_space<vmem>>, vector<32x32xbf16>
    %c0_1 = arith.constant 0 : index
    %c0_2 = arith.constant 0 : index
    %1 = vector.load %arg13[%c0_1, %c0_2] : memref<1x32xi32, #tpu.memory_space<vmem>>, vector<1x32xi32>
    %c0_3 = arith.constant 0 : index
    %c0_4 = arith.constant 0 : index
    %2 = vector.load %arg1[%c0_3, %c0_4] : memref<16x32xf32, #tpu.memory_space<vmem>>, vector<16x32xf32>
    %3 = arith.mulf %2, %2 : vector<16x32xf32>
    %cst = arith.constant dense<0.000000e+00> : vector<16xf32>
    %4 = vector.multi_reduction <add>, %3, %cst [1] : vector<16x32xf32> to vector<16xf32>
    %5 = vector.shape_cast %4 : vector<16xf32> to vector<16x1xf32>
    %cst_5 = arith.constant 1.000000e-24 : f32
    %6 = vector.broadcast %cst_5 : f32 to vector<16x1xf32>
    %7 = arith.maximumf %5, %6 : vector<16x1xf32>
    %8 = math.rsqrt %7 : vector<16x1xf32>
    %9 = vector.broadcast %8 : vector<16x1xf32> to vector<16x32xf32>
    %10 = arith.mulf %2, %9 : vector<16x32xf32>
    %11 = arith.truncf %10 : vector<16x32xf32> to vector<16x32xbf16>
    %cst_6 = arith.constant dense<0.000000e+00> : vector<16x32xf32>
    %12 = tpu.matmul %11, %0, %cst_6 {dimension_numbers = #tpu.dot_dimension_numbers<[1], [0], [0], [1], [0, 0, 1, 1], [], []>} : vector<16x32xbf16>, vector<32x32xbf16>, vector<16x32xf32> -> vector<16x32xf32>
    %cst_7 = arith.constant 1.000000e+01 : f32
    %13 = vector.broadcast %cst_7 : f32 to vector<16x32xf32>
    %14 = arith.mulf %12, %13 : vector<16x32xf32>
    %c0_8 = arith.constant 0 : index
    %c0_9 = arith.constant 0 : index
    %15 = vector.load %arg4[%c0_8, %c0_9] : memref<16x1xi32, #tpu.memory_space<vmem>>, vector<16x1xi32>
    %c0_10 = arith.constant 0 : index
    %c0_11 = arith.constant 0 : index
    %16 = vector.load %arg5[%c0_10, %c0_11] : memref<16x1xi32, #tpu.memory_space<vmem>>, vector<16x1xi32>
    %17 = vector.broadcast %15 : vector<16x1xi32> to vector<16x32xi32>
    %18 = vector.broadcast %1 : vector<1x32xi32> to vector<16x32xi32>
    %19 = arith.cmpi eq, %17, %18 : vector<16x32xi32>
    %20 = vector.broadcast %16 : vector<16x1xi32> to vector<16x32xi32>
    %21 = vector.broadcast %1 : vector<1x32xi32> to vector<16x32xi32>
    %22 = arith.cmpi eq, %20, %21 : vector<16x32xi32>
    %cst_12 = arith.constant 1.000000e+04 : f32
    %23 = vector.broadcast %cst_12 : f32 to vector<16x32xf32>
    %24 = arith.subf %14, %23 : vector<16x32xf32>
    %25 = arith.select %22, %24, %14 : vector<16x32xi1>, vector<16x32xf32>
    %cst_13 = arith.constant dense<0xFF800000> : vector<16xf32>
    %26 = vector.multi_reduction <maximumf>, %25, %cst_13 [1] : vector<16x32xf32> to vector<16xf32>
    %27 = vector.shape_cast %26 : vector<16xf32> to vector<16x1xf32>
    %28 = vector.broadcast %27 : vector<16x1xf32> to vector<16x32xf32>
    %29 = arith.subf %25, %28 : vector<16x32xf32>
    %30 = math.exp %29 : vector<16x32xf32>
    %cst_14 = arith.constant dense<0.000000e+00> : vector<16xf32>
    %31 = vector.multi_reduction <add>, %30, %cst_14 [1] : vector<16x32xf32> to vector<16xf32>
    %32 = vector.shape_cast %31 : vector<16xf32> to vector<16x1xf32>
    %33 = math.log %32 : vector<16x1xf32>
    %34 = arith.addf %27, %33 : vector<16x1xf32>
    %cst_15 = arith.constant 0.000000e+00 : f32
    %35 = vector.broadcast %cst_15 : f32 to vector<16x32xf32>
    %36 = arith.select %19, %25, %35 : vector<16x32xi1>, vector<16x32xf32>
    %cst_16 = arith.constant dense<0.000000e+00> : vector<16xf32>
    %37 = vector.multi_reduction <add>, %36, %cst_16 [1] : vector<16x32xf32> to vector<16xf32>
    %38 = vector.shape_cast %37 : vector<16xf32> to vector<16x1xf32>
    %c0_17 = arith.constant 0 : index
    %c0_18 = arith.constant 0 : index
    %39 = vector.load %arg10[%c0_17, %c0_18] : memref<16x1xf32, #tpu.memory_space<vmem>>, vector<16x1xf32>
    %40 = arith.mulf %39, %34 : vector<16x1xf32>
    %c0_19 = arith.constant 0 : index
    %c0_20 = arith.constant 0 : index
    %41 = vector.load %arg9[%c0_19, %c0_20] : memref<16x1xf32, #tpu.memory_space<vmem>>, vector<16x1xf32>
    %42 = arith.mulf %41, %38 : vector<16x1xf32>
    %43 = arith.subf %40, %42 : vector<16x1xf32>
    %c0_21 = arith.constant 0 : index
    %c0_22 = arith.constant 0 : index
    %44 = vector.load %arg2[%c0_21, %c0_22] : memref<16x32xf32, #tpu.memory_space<vmem>>, vector<16x32xf32>
    %45 = arith.mulf %44, %44 : vector<16x32xf32>
    %cst_23 = arith.constant dense<0.000000e+00> : vector<16xf32>
    %46 = vector.multi_reduction <add>, %45, %cst_23 [1] : vector<16x32xf32> to vector<16xf32>
    %47 = vector.shape_cast %46 : vector<16xf32> to vector<16x1xf32>
    %cst_24 = arith.constant 1.000000e-24 : f32
    %48 = vector.broadcast %cst_24 : f32 to vector<16x1xf32>
    %49 = arith.maximumf %47, %48 : vector<16x1xf32>
    %50 = math.rsqrt %49 : vector<16x1xf32>
    %51 = vector.broadcast %50 : vector<16x1xf32> to vector<16x32xf32>
    %52 = arith.mulf %44, %51 : vector<16x32xf32>
    %53 = arith.truncf %52 : vector<16x32xf32> to vector<16x32xbf16>
    %cst_25 = arith.constant dense<0.000000e+00> : vector<16x32xf32>
    %54 = tpu.matmul %53, %0, %cst_25 {dimension_numbers = #tpu.dot_dimension_numbers<[1], [0], [0], [1], [0, 0, 1, 1], [], []>} : vector<16x32xbf16>, vector<32x32xbf16>, vector<16x32xf32> -> vector<16x32xf32>
    %cst_26 = arith.constant 1.000000e+01 : f32
    %55 = vector.broadcast %cst_26 : f32 to vector<16x32xf32>
    %56 = arith.mulf %54, %55 : vector<16x32xf32>
    %c0_27 = arith.constant 0 : index
    %c0_28 = arith.constant 0 : index
    %57 = vector.load %arg6[%c0_27, %c0_28] : memref<16x1xi32, #tpu.memory_space<vmem>>, vector<16x1xi32>
    %c0_29 = arith.constant 0 : index
    %c0_30 = arith.constant 0 : index
    %58 = vector.load %arg7[%c0_29, %c0_30] : memref<16x1xi32, #tpu.memory_space<vmem>>, vector<16x1xi32>
    %59 = vector.broadcast %57 : vector<16x1xi32> to vector<16x32xi32>
    %60 = vector.broadcast %1 : vector<1x32xi32> to vector<16x32xi32>
    %61 = arith.cmpi eq, %59, %60 : vector<16x32xi32>
    %62 = vector.broadcast %58 : vector<16x1xi32> to vector<16x32xi32>
    %63 = vector.broadcast %1 : vector<1x32xi32> to vector<16x32xi32>
    %64 = arith.cmpi eq, %62, %63 : vector<16x32xi32>
    %cst_31 = arith.constant 1.000000e+04 : f32
    %65 = vector.broadcast %cst_31 : f32 to vector<16x32xf32>
    %66 = arith.subf %56, %65 : vector<16x32xf32>
    %67 = arith.select %64, %66, %56 : vector<16x32xi1>, vector<16x32xf32>
    %cst_32 = arith.constant dense<0xFF800000> : vector<16xf32>
    %68 = vector.multi_reduction <maximumf>, %67, %cst_32 [1] : vector<16x32xf32> to vector<16xf32>
    %69 = vector.shape_cast %68 : vector<16xf32> to vector<16x1xf32>
    %70 = vector.broadcast %69 : vector<16x1xf32> to vector<16x32xf32>
    %71 = arith.subf %67, %70 : vector<16x32xf32>
    %72 = math.exp %71 : vector<16x32xf32>
    %cst_33 = arith.constant dense<0.000000e+00> : vector<16xf32>
    %73 = vector.multi_reduction <add>, %72, %cst_33 [1] : vector<16x32xf32> to vector<16xf32>
    %74 = vector.shape_cast %73 : vector<16xf32> to vector<16x1xf32>
    %75 = math.log %74 : vector<16x1xf32>
    %76 = arith.addf %69, %75 : vector<16x1xf32>
    %cst_34 = arith.constant 0.000000e+00 : f32
    %77 = vector.broadcast %cst_34 : f32 to vector<16x32xf32>
    %78 = arith.select %61, %67, %77 : vector<16x32xi1>, vector<16x32xf32>
    %cst_35 = arith.constant dense<0.000000e+00> : vector<16xf32>
    %79 = vector.multi_reduction <add>, %78, %cst_35 [1] : vector<16x32xf32> to vector<16xf32>
    %80 = vector.shape_cast %79 : vector<16xf32> to vector<16x1xf32>
    %c0_36 = arith.constant 0 : index
    %c0_37 = arith.constant 0 : index
    %81 = vector.load %arg12[%c0_36, %c0_37] : memref<16x1xf32, #tpu.memory_space<vmem>>, vector<16x1xf32>
    %82 = arith.mulf %81, %76 : vector<16x1xf32>
    %c0_38 = arith.constant 0 : index
    %c0_39 = arith.constant 0 : index
    %83 = vector.load %arg11[%c0_38, %c0_39] : memref<16x1xf32, #tpu.memory_space<vmem>>, vector<16x1xf32>
    %84 = arith.mulf %83, %80 : vector<16x1xf32>
    %85 = arith.subf %82, %84 : vector<16x1xf32>
    %86 = arith.addf %43, %85 : vector<16x1xf32>
    %87 = vector.shape_cast %86 : vector<16x1xf32> to vector<1x16x1xf32>
    %cst_40 = arith.constant dense<0.000000e+00> : vector<1xf32>
    %88 = vector.multi_reduction <add>, %87, %cst_40 [1, 2] : vector<1x16x1xf32> to vector<1xf32>
    %89 = vector.shape_cast %88 : vector<1xf32> to vector<1x1x1xf32>
    %90 = vector.extract %89[0, 0, 0] : f32 from vector<1x1x1xf32>
    %91 = vector.broadcast %90 : f32 to vector<1x8x128xf32>
    %c0_41 = arith.constant 0 : index
    %c0_42 = arith.constant 0 : index
    %c0_43 = arith.constant 0 : index
    %92 = vector.load %arg15[%c0_41, %c0_42, %c0_43] : memref<1x8x128xf32, #tpu.memory_space<vmem>>, vector<1x8x128xf32>
    tpu.vector_store %arg15[%c0_41, %c0_42, %c0_43], %91 {strides = array<i32>} : memref<1x8x128xf32, #tpu.memory_space<vmem>>, vector<1x8x128xf32>,
    return
  }
  func.func @transform_0(%arg0: i32) -> (i32, i32) {
    %c0_i32 = arith.constant 0 : i32
    %c0_i32_0 = arith.constant 0 : i32
    return %arg0, %c0_i32 : i32, i32
  }
  func.func @transform_1(%arg0: i32) -> (i32, i32) {
    %c0_i32 = arith.constant 0 : i32
    %c0_i32_0 = arith.constant 0 : i32
    return %arg0, %c0_i32 : i32, i32
  }
  func.func @transform_2(%arg0: i32) -> (i32, i32) {
    %c0_i32 = arith.constant 0 : i32
    %c0_i32_0 = arith.constant 0 : i32
    %c0_i32_1 = arith.constant 0 : i32
    return %c0_i32, %c0_i32_0 : i32, i32
  }
  func.func @transform_3(%arg0: i32) -> (i32, i32) {
    %c0_i32 = arith.constant 0 : i32
    %c0_i32_0 = arith.constant 0 : i32
    return %arg0, %c0_i32 : i32, i32
  }
  func.func @transform_4(%arg0: i32) -> (i32, i32) {
    %c0_i32 = arith.constant 0 : i32
    %c0_i32_0 = arith.constant 0 : i32
    return %arg0, %c0_i32 : i32, i32
  }
  func.func @transform_5(%arg0: i32) -> (i32, i32) {
    %c0_i32 = arith.constant 0 : i32
    %c0_i32_0 = arith.constant 0 : i32
    return %arg0, %c0_i32 : i32, i32
  }
  func.func @transform_6(%arg0: i32) -> (i32, i32) {
    %c0_i32 = arith.constant 0 : i32
    %c0_i32_0 = arith.constant 0 : i32
    return %arg0, %c0_i32 : i32, i32
  }
  func.func @transform_7(%arg0: i32) -> (i32, i32) {
    %c0_i32 = arith.constant 0 : i32
    %c0_i32_0 = arith.constant 0 : i32
    return %arg0, %c0_i32 : i32, i32
  }
  func.func @transform_8(%arg0: i32) -> (i32, i32) {
    %c0_i32 = arith.constant 0 : i32
    %c0_i32_0 = arith.constant 0 : i32
    return %arg0, %c0_i32 : i32, i32
  }
  func.func @transform_9(%arg0: i32) -> (i32, i32) {
    %c0_i32 = arith.constant 0 : i32
    %c0_i32_0 = arith.constant 0 : i32
    return %arg0, %c0_i32 : i32, i32
  }
  func.func @transform_10(%arg0: i32) -> (i32, i32) {
    %c0_i32 = arith.constant 0 : i32
    %c0_i32_0 = arith.constant 0 : i32
    return %arg0, %c0_i32 : i32, i32
  }
  func.func @transform_11(%arg0: i32) -> (i32, i32) {
    %c0_i32 = arith.constant 0 : i32
    %c0_i32_0 = arith.constant 0 : i32
    return %arg0, %c0_i32 : i32, i32
  }
  func.func @transform_12(%arg0: i32) -> (i32, i32) {
    %c0_i32 = arith.constant 0 : i32
    %c0_i32_0 = arith.constant 0 : i32
    %c0_i32_1 = arith.constant 0 : i32
    return %c0_i32, %c0_i32_0 : i32, i32
  }
  func.func @transform_13(%arg0: i32) -> (i32, i32) {
    %c0_i32 = arith.constant 0 : i32
    %c0_i32_0 = arith.constant 0 : i32
    %c0_i32_1 = arith.constant 0 : i32
    return %c0_i32, %c0_i32_0 : i32, i32
  }
  func.func @transform_14(%arg0: i32) -> (i32, i32, i32) {
    %c0_i32 = arith.constant 0 : i32
    %c0_i32_0 = arith.constant 0 : i32
    %c0_i32_1 = arith.constant 0 : i32
    return %arg0, %c0_i32, %c0_i32_0 : i32, i32, i32
  }
}

</mosaic_0001>

<llo_original>
// kernel: tpu_custom_call.1
$region0: #{tpu_custom_call.1}
  #allocation0 [shape = 'u32[]', space=smem, size = 0x4, offset = 0x4, fixed_abs, tag = 'smem constant byte address 0x4 - core index']
  #allocation1 [shape = 'u32[144,128]{1,0:T(1,128)}', space=vmem, size = 0x12000, scoped, tag = 'internal scratch']
  %s0 = inlined_call_operand.vmem [shape: f32[16,32], index: 0, kind: input, shape index: {}]
  %s1 = inlined_call_operand.vmem [shape: f32[16,32], index: 1, kind: input, shape index: {}]
  %s2 = inlined_call_operand.vmem [shape: bf16[32,32], index: 2, kind: input, shape index: {}]
  %s3 = inlined_call_operand.vmem [shape: s32[16,1], index: 3, kind: input, shape index: {}]
  %s4 = inlined_call_operand.vmem [shape: s32[16,1], index: 4, kind: input, shape index: {}]
  %s5 = inlined_call_operand.vmem [shape: s32[16,1], index: 5, kind: input, shape index: {}]
  %s6 = inlined_call_operand.vmem [shape: s32[16,1], index: 6, kind: input, shape index: {}]
  %s7 = inlined_call_operand.vmem [shape: s32[16,1], index: 7, kind: input, shape index: {}]
  %s8 = inlined_call_operand.vmem [shape: f32[16,1], index: 8, kind: input, shape index: {}]
  %s9 = inlined_call_operand.vmem [shape: f32[16,1], index: 9, kind: input, shape index: {}]
  %s10 = inlined_call_operand.vmem [shape: f32[16,1], index: 10, kind: input, shape index: {}]
  %s11 = inlined_call_operand.vmem [shape: f32[16,1], index: 11, kind: input, shape index: {}]
  %s12 = inlined_call_operand.vmem [shape: s32[1,32], index: 12, kind: input, shape index: {}]
  %s13 = inlined_call_operand.vmem [shape: s32[1,32], index: 13, kind: input, shape index: {}]
  %s14 = inlined_call_operand.hbm [shape: f32[1,8,128], index: 14, kind: output, shape index: {}]
  %s15 = sld [smem:[#allocation0]]
  $region66: #{tpu_custom_call.1} parent=0
    _
  %s17 = ssub.s32 1, %s15
  %s18 = scalar_select 0, %s17, %s15
  $region1: #{tpu_custom_call.1} parent=0
    #allocation2 [shape = 'u8[4096]{0}', space=vmem, size = 0x1000, scoped, tag = 'output window, operand 0, single buffered']
    #allocation3 [shape = 's32[1]{0}', space=sflag, size = 0x4, scoped, tag = 'scoped memory for tpu_custom_call.1']
    %19 = vsyncpa [#allocation3], 0
    // Predicated region
    $region2: #{tpu_custom_call.1} parent=1 // pred_check
      _
    $region3: #{tpu_custom_call.1} parent=1 // pred_check_branch
      %21 = sbr.rel (0) target = $region5
    $region4: #{tpu_custom_call.1} parent=1 // pred_region
      _
    $region5: #{tpu_custom_call.1} parent=1 // pred_fallthru
      _
    // Predicated region
    $region6: #{tpu_custom_call.1} parent=1 // pred_check
      _
    $region7: #{tpu_custom_call.1} parent=1 // pred_check_branch
      %23 = sbr.rel (0) target = $region9
    $region8: #{tpu_custom_call.1} parent=1 // pred_region
      _
    $region9: #{tpu_custom_call.1} parent=1 // pred_fallthru
      _
    // Predicated region
    $region10: #{tpu_custom_call.1} parent=1 // pred_check
      _
    $region11: #{tpu_custom_call.1} parent=1 // pred_check_branch
      %25 = sbr.rel (0) target = $region13
    $region12: #{tpu_custom_call.1} parent=1 // pred_region
      _
    $region13: #{tpu_custom_call.1} parent=1 // pred_fallthru
      _
    // Predicated region
    $region14: #{tpu_custom_call.1} parent=1 // pred_check
      _
    $region15: #{tpu_custom_call.1} parent=1 // pred_check_branch
      %27 = sbr.rel (0) target = $region17
    $region16: #{tpu_custom_call.1} parent=1 // pred_region
      _
    $region17: #{tpu_custom_call.1} parent=1 // pred_fallthru
      _
    // Predicated region
    $region18: #{tpu_custom_call.1} parent=1 // pred_check
      _
    $region19: #{tpu_custom_call.1} parent=1 // pred_check_branch
      %29 = sbr.rel (0) target = $region21
    $region20: #{tpu_custom_call.1} parent=1 // pred_region
      _
    $region21: #{tpu_custom_call.1} parent=1 // pred_fallthru
      _
    // Predicated region
    $region22: #{tpu_custom_call.1} parent=1 // pred_check
      _
    $region23: #{tpu_custom_call.1} parent=1 // pred_check_branch
      %31 = sbr.rel (0) target = $region25
    $region24: #{tpu_custom_call.1} parent=1 // pred_region
      _
    $region25: #{tpu_custom_call.1} parent=1 // pred_fallthru
      _
    // Predicated region
    $region26: #{tpu_custom_call.1} parent=1 // pred_check
      _
    $region27: #{tpu_custom_call.1} parent=1 // pred_check_branch
      %33 = sbr.rel (0) target = $region29
    $region28: #{tpu_custom_call.1} parent=1 // pred_region
      _
    $region29: #{tpu_custom_call.1} parent=1 // pred_fallthru
      _
    // Predicated region
    $region30: #{tpu_custom_call.1} parent=1 // pred_check
      _
    $region31: #{tpu_custom_call.1} parent=1 // pred_check_branch
      %35 = sbr.rel (0) target = $region33
    $region32: #{tpu_custom_call.1} parent=1 // pred_region
      _
    $region33: #{tpu_custom_call.1} parent=1 // pred_fallthru
      _
    // Predicated region
    $region34: #{tpu_custom_call.1} parent=1 // pred_check
      _
    $region35: #{tpu_custom_call.1} parent=1 // pred_check_branch
      %37 = sbr.rel (0) target = $region37
    $region36: #{tpu_custom_call.1} parent=1 // pred_region
      _
    $region37: #{tpu_custom_call.1} parent=1 // pred_fallthru
      _
    // Predicated region
    $region38: #{tpu_custom_call.1} parent=1 // pred_check
      _
    $region39: #{tpu_custom_call.1} parent=1 // pred_check_branch
      %39 = sbr.rel (0) target = $region41
    $region40: #{tpu_custom_call.1} parent=1 // pred_region
      _
    $region41: #{tpu_custom_call.1} parent=1 // pred_fallthru
      _
    // Predicated region
    $region42: #{tpu_custom_call.1} parent=1 // pred_check
      _
    $region43: #{tpu_custom_call.1} parent=1 // pred_check_branch
      %41 = sbr.rel (0) target = $region45
    $region44: #{tpu_custom_call.1} parent=1 // pred_region
      _
    $region45: #{tpu_custom_call.1} parent=1 // pred_fallthru
      _
    // Predicated region
    $region46: #{tpu_custom_call.1} parent=1 // pred_check
      _
    $region47: #{tpu_custom_call.1} parent=1 // pred_check_branch
      %43 = sbr.rel (0) target = $region49
    $region48: #{tpu_custom_call.1} parent=1 // pred_region
      _
    $region49: #{tpu_custom_call.1} parent=1 // pred_fallthru
      _
    // Predicated region
    $region50: #{tpu_custom_call.1} parent=1 // pred_check
      _
    $region51: #{tpu_custom_call.1} parent=1 // pred_check_branch
      %45 = sbr.rel (0) target = $region53
    $region52: #{tpu_custom_call.1} parent=1 // pred_region
      _
    $region53: #{tpu_custom_call.1} parent=1 // pred_fallthru
      _
    // Predicated region
    $region54: #{tpu_custom_call.1} parent=1 // pred_check
      _
    $region55: #{tpu_custom_call.1} parent=1 // pred_check_branch
      %47 = sbr.rel (0) target = $region57
    $region56: #{tpu_custom_call.1} parent=1 // pred_region
      _
    $region57: #{tpu_custom_call.1} parent=1 // pred_fallthru
      _
    %v49 = vld [vmem:[%s2] sm:$0xf]
    %v50 = vld [vmem:[%s2 + $0x4] sm:$0xf]
    %v51 = vld [vmem:[%s2 + $0x8] sm:$0xf]
    %v52 = vld [vmem:[%s2 + $0xc] sm:$0xf]
    %v53 = vld [vmem:[%s12] sm:$0x1]
    %v54 = vld [vmem:[%s0] sm:$0xff]
    %v55 = vld [vmem:[%s0 + $0x8] sm:$0xff]
    %v56 = vmul.f32 %v54, %v54
    %v57 = vmul.f32 %v55, %v55
    %vm58 = vcmask 261120
    %v59 = vsel %vm58, %v56, 0.0
    %60 = vadd.xlane.f32.xlu0 %v59
    %v61 = vpop.xlane.xlu0 %60
    %v62 = vsel %vm58, %v57, 0.0
    %63 = vadd.xlane.f32.xlu0 %v62
    %v64 = vpop.xlane.xlu0 %63
    %v65 = vmax.f32 %v61, 1e-24
    %v66 = vmax.f32 %v64, 1e-24
    %v67 = vrsqrt.pop %v65
    %v68 = vrsqrt.pop %v66
    %v69 = vmul.f32 %v54, %v67
    %v70 = vmul.f32 %v55, %v68
    %v71 = vpack.c.bf16 %v70, %v69
    %v76 = vunpack.c.l.b16 %v49
    %v77 = vunpack.c.l.b16 %v50
    %v78 = vunpack.c.l.b16 %v51
    %v79 = vunpack.c.l.b16 %v52
    %v80 = vpack.c.b16 %v77, %v76
    %v81 = vpack.c.b16 %v79, %v78
    %v85 = vsel %vm58, %v71, 0
    %87 = vmatprep.subr.bf16.mxu0 0
    %88 = vmatpush1.bf16.msra.mxu0 %v80
    %89 = vmatprep.subr.bf16.mxu0 0
    %90 = vmatpush1.bf16.msra.mxu0 %v81
    %91 = vmatprep.subr.bf16.mxu0 0
    %92 = vmatpush1.bf16.msra.mxu0 0
    %93 = vmatprep.subr.bf16.mxu0 0
    %94 = vmatpush1.bf16.msra.mxu0 0
    %95 = vmatprep.subr.bf16.mxu0 0
    %96 = vmatpush1.bf16.msra.mxu0 0
    %97 = vmatprep.subr.bf16.mxu0 0
    %98 = vmatpush1.bf16.msra.mxu0 0
    %99 = vmatprep.subr.bf16.mxu0 0
    %100 = vmatpush1.bf16.msra.mxu0 0
    %101 = vmatprep.subr.bf16.mxu0 0
    %102 = vmatpush1.bf16.msra.mxu0 0
    %103 = vmatprep.subr.bf16.mxu0 0
    %104 = vmatpush1.bf16.msra.mxu0 0
    %105 = vmatprep.subr.bf16.mxu0 0
    %106 = vmatpush1.bf16.msra.mxu0 0
    %107 = vmatprep.subr.bf16.mxu0 0
    %108 = vmatpush1.bf16.msra.mxu0 0
    %109 = vmatprep.subr.bf16.mxu0 0
    %110 = vmatpush1.bf16.msra.mxu0 0
    %111 = vmatprep.subr.bf16.mxu0 0
    %112 = vmatpush1.bf16.msra.mxu0 0
    %113 = vmatprep.subr.bf16.mxu0 0
    %114 = vmatpush1.bf16.msra.mxu0 0
    %115 = vmatprep.subr.bf16.mxu0 0
    %116 = vmatpush1.bf16.msra.mxu0 0
    %117 = vmatprep.subr.bf16.mxu0 0
    %118 = vmatpush1.bf16.msra.mxu0 0
    %119 = vmatprep.mubr.bf16.mxu0 0
    %120 = vmatmul.mubr.bf16.gmra.mrb[0].mxu0 %v85
    %v121 = vpop.f32.mrb[0].mxu0
    %v122 = vadd.f32 0.0, %v121
    %v123 = vpop.f32.mrb[0].mxu0
    %v124 = vpop.f32.mrb[0].mxu0
    %v125 = vadd.f32 0.0, %v124
    %v126 = vpop.f32.mrb[0].mxu0
    %127 = vdwg.mxu0
    %v128 = vmul.f32 %v122, 10.0
    %v129 = vmul.f32 %v125, 10.0
    %v130 = vld [vmem:[%s3] sm:$0xff]
    %v131 = vld [vmem:[%s3 + $0x8] sm:$0xff]
    %v132 = vld [vmem:[%s4] sm:$0xff]
    %v133 = vld [vmem:[%s4 + $0x8] sm:$0xff]
    %134 = vset.pattern.permute.xlu0 0
    %135 = vperm.xlu0 %134, %v130
    %v136 = vpop.permute.xlu0 %135
    %137 = vset.pattern.permute.xlu0 0
    %138 = vperm.xlu0 %137, %v131
    %v139 = vpop.permute.xlu0 %138
    %v140 = vlaneseq
    %v141 = vshrl.u32 %v140, 7
    %v142 = vsub.s32 0, %v141
    %v143 = vrot.slane %v53, %v142
    %vm144 = vcmp.eq.s32.totalorder %v136, %v143
    %vm145 = vcmp.eq.s32.totalorder %v139, %v143
    %146 = vset.pattern.permute.xlu0 0
    %147 = vperm.xlu0 %146, %v132
    %v148 = vpop.permute.xlu0 %147
    %149 = vset.pattern.permute.xlu0 0
    %150 = vperm.xlu0 %149, %v133
    %v151 = vpop.permute.xlu0 %150
    %vm152 = vcmp.eq.s32.totalorder %v148, %v143
    %vm153 = vcmp.eq.s32.totalorder %v151, %v143
    %v154 = vsub.f32 %v128, 10000.0
    %v155 = vsub.f32 %v129, 10000.0
    %v156 = vsel %vm152, %v154, %v128
    %v157 = vsel %vm153, %v155, %v129
    %v158 = vsel %vm58, %v156, -inf
    %159 = vmax.xlane.f32.xlu0 %v158
    %v160 = vpop.xlane.xlu0 %159
    %v161 = vsel %vm58, %v157, -inf
    %162 = vmax.xlane.f32.xlu0 %v161
    %v163 = vpop.xlane.xlu0 %162
    %v164 = vsub.f32 %v156, %v160
    %v165 = vsub.f32 %v157, %v163
    %v166 = vmul.f32 %v164, 1.442695
    %v167 = vpow.pop %v166
    %v168 = vmul.f32 %v165, 1.442695
    %v169 = vpow.pop %v168
    %v170 = vsel %vm58, %v167, 0.0
    %171 = vadd.xlane.f32.xlu0 %v170
    %v172 = vpop.xlane.xlu0 %171
    %v173 = vsel %vm58, %v169, 0.0
    %174 = vadd.xlane.f32.xlu0 %v173
    %v175 = vpop.xlane.xlu0 %174
    %v176 = vlog2.pop %v172
    %v177 = vmul.f32 %v176, 0.6931472
    %v178 = vlog2.pop %v175
    %v179 = vmul.f32 %v178, 0.6931472
    %v180 = vadd.f32 %v160, %v177
    %v181 = vadd.f32 %v163, %v179
    %v182 = vsel %vm144, %v156, 0.0
    %v183 = vsel %vm145, %v157, 0.0
    %v184 = vsel %vm58, %v182, 0.0
    %185 = vadd.xlane.f32.xlu0 %v184
    %v186 = vpop.xlane.xlu0 %185
    %v187 = vsel %vm58, %v183, 0.0
    %188 = vadd.xlane.f32.xlu0 %v187
    %v189 = vpop.xlane.xlu0 %188
    %v190 = vld [vmem:[%s9] sm:$0xff]
    %v191 = vld [vmem:[%s9 + $0x8] sm:$0xff]
    %v192 = vmul.f32 %v190, %v180
    %v193 = vmul.f32 %v191, %v181
    %v194 = vld [vmem:[%s8] sm:$0xff]
    %v195 = vld [vmem:[%s8 + $0x8] sm:$0xff]
    %v196 = vmul.f32 %v194, %v186
    %v197 = vmul.f32 %v195, %v189
    %v198 = vsub.f32 %v192, %v196
    %v199 = vsub.f32 %v193, %v197
    %v200 = vld [vmem:[%s1] sm:$0xff]
    %v201 = vld [vmem:[%s1 + $0x8] sm:$0xff]
    %v202 = vmul.f32 %v200, %v200
    %v203 = vmul.f32 %v201, %v201
    %v204 = vsel %vm58, %v202, 0.0
    %205 = vadd.xlane.f32.xlu0 %v204
    %v206 = vpop.xlane.xlu0 %205
    %v207 = vsel %vm58, %v203, 0.0
    %208 = vadd.xlane.f32.xlu0 %v207
    %v209 = vpop.xlane.xlu0 %208
    %v210 = vmax.f32 %v206, 1e-24
    %v211 = vmax.f32 %v209, 1e-24
    %v212 = vrsqrt.pop %v210
    %v213 = vrsqrt.pop %v211
    %v214 = vmul.f32 %v200, %v212
    %v215 = vmul.f32 %v201, %v213
    %v216 = vpack.c.bf16 %v215, %v214
    %v218 = vsel %vm58, %v216, 0
    %220 = vmatprep.subr.bf16.mxu0 0
    %221 = vmatpush1.bf16.msra.mxu0 %v80
    %222 = vmatprep.subr.bf16.mxu0 0
    %223 = vmatpush1.bf16.msra.mxu0 %v81
    %224 = vmatprep.subr.bf16.mxu0 0
    %225 = vmatpush1.bf16.msra.mxu0 0
    %226 = vmatprep.subr.bf16.mxu0 0
    %227 = vmatpush1.bf16.msra.mxu0 0
    %228 = vmatprep.subr.bf16.mxu0 0
    %229 = vmatpush1.bf16.msra.mxu0 0
    %230 = vmatprep.subr.bf16.mxu0 0
    %231 = vmatpush1.bf16.msra.mxu0 0
    %232 = vmatprep.subr.bf16.mxu0 0
    %233 = vmatpush1.bf16.msra.mxu0 0
    %234 = vmatprep.subr.bf16.mxu0 0
    %235 = vmatpush1.bf16.msra.mxu0 0
    %236 = vmatprep.subr.bf16.mxu0 0
    %237 = vmatpush1.bf16.msra.mxu0 0
    %238 = vmatprep.subr.bf16.mxu0 0
    %239 = vmatpush1.bf16.msra.mxu0 0
    %240 = vmatprep.subr.bf16.mxu0 0
    %241 = vmatpush1.bf16.msra.mxu0 0
    %242 = vmatprep.subr.bf16.mxu0 0
    %243 = vmatpush1.bf16.msra.mxu0 0
    %244 = vmatprep.subr.bf16.mxu0 0
    %245 = vmatpush1.bf16.msra.mxu0 0
    %246 = vmatprep.subr.bf16.mxu0 0
    %247 = vmatpush1.bf16.msra.mxu0 0
    %248 = vmatprep.subr.bf16.mxu0 0
    %249 = vmatpush1.bf16.msra.mxu0 0
    %250 = vmatprep.subr.bf16.mxu0 0
    %251 = vmatpush1.bf16.msra.mxu0 0
    %252 = vmatprep.mubr.bf16.mxu0 0
    %253 = vmatmul.mubr.bf16.gmra.mrb[0].mxu0 %v218
    %v254 = vpop.f32.mrb[0].mxu0
    %v255 = vadd.f32 0.0, %v254
    %v256 = vpop.f32.mrb[0].mxu0
    %v257 = vpop.f32.mrb[0].mxu0
    %v258 = vadd.f32 0.0, %v257
    %v259 = vpop.f32.mrb[0].mxu0
    %260 = vdwg.mxu0
    %v261 = vmul.f32 %v255, 10.0
    %v262 = vmul.f32 %v258, 10.0
    %v263 = vld [vmem:[%s5] sm:$0xff]
    %v264 = vld [vmem:[%s5 + $0x8] sm:$0xff]
    %v265 = vld [vmem:[%s6] sm:$0xff]
    %v266 = vld [vmem:[%s6 + $0x8] sm:$0xff]
    %267 = vset.pattern.permute.xlu0 0
    %268 = vperm.xlu0 %267, %v263
    %v269 = vpop.permute.xlu0 %268
    %270 = vset.pattern.permute.xlu0 0
    %271 = vperm.xlu0 %270, %v264
    %v272 = vpop.permute.xlu0 %271
    %vm273 = vcmp.eq.s32.totalorder %v269, %v143
    %vm274 = vcmp.eq.s32.totalorder %v272, %v143
    %275 = vset.pattern.permute.xlu0 0
    %276 = vperm.xlu0 %275, %v265
    %v277 = vpop.permute.xlu0 %276
    %278 = vset.pattern.permute.xlu0 0
    %279 = vperm.xlu0 %278, %v266
    %v280 = vpop.permute.xlu0 %279
    %vm281 = vcmp.eq.s32.totalorder %v277, %v143
    %vm282 = vcmp.eq.s32.totalorder %v280, %v143
    %v283 = vsub.f32 %v261, 10000.0
    %v284 = vsub.f32 %v262, 10000.0
    %v285 = vsel %vm281, %v283, %v261
    %v286 = vsel %vm282, %v284, %v262
    %v287 = vsel %vm58, %v285, -inf
    %288 = vmax.xlane.f32.xlu0 %v287
    %v289 = vpop.xlane.xlu0 %288
    %v290 = vsel %vm58, %v286, -inf
    %291 = vmax.xlane.f32.xlu0 %v290
    %v292 = vpop.xlane.xlu0 %291
    %v293 = vsub.f32 %v285, %v289
    %v294 = vsub.f32 %v286, %v292
    %v295 = vmul.f32 %v293, 1.442695
    %v296 = vpow.pop %v295
    %v297 = vmul.f32 %v294, 1.442695
    %v298 = vpow.pop %v297
    %v299 = vsel %vm58, %v296, 0.0
    %300 = vadd.xlane.f32.xlu0 %v299
    %v301 = vpop.xlane.xlu0 %300
    %v302 = vsel %vm58, %v298, 0.0
    %303 = vadd.xlane.f32.xlu0 %v302
    %v304 = vpop.xlane.xlu0 %303
    %v305 = vlog2.pop %v301
    %v306 = vmul.f32 %v305, 0.6931472
    %v307 = vlog2.pop %v304
    %v308 = vmul.f32 %v307, 0.6931472
    %v309 = vadd.f32 %v289, %v306
    %v310 = vadd.f32 %v292, %v308
    %v311 = vsel %vm273, %v285, 0.0
    %v312 = vsel %vm274, %v286, 0.0
    %v313 = vsel %vm58, %v311, 0.0
    %314 = vadd.xlane.f32.xlu0 %v313
    %v315 = vpop.xlane.xlu0 %314
    %v316 = vsel %vm58, %v312, 0.0
    %317 = vadd.xlane.f32.xlu0 %v316
    %v318 = vpop.xlane.xlu0 %317
    %v319 = vld [vmem:[%s11] sm:$0xff]
    %v320 = vld [vmem:[%s11 + $0x8] sm:$0xff]
    %v321 = vmul.f32 %v319, %v309
    %v322 = vmul.f32 %v320, %v310
    %v323 = vld [vmem:[%s10] sm:$0xff]
    %v324 = vld [vmem:[%s10 + $0x8] sm:$0xff]
    %v325 = vmul.f32 %v323, %v315
    %v326 = vmul.f32 %v324, %v318
    %v327 = vsub.f32 %v321, %v325
    %v328 = vsub.f32 %v322, %v326
    %v329 = vadd.f32 %v198, %v327
    %v330 = vadd.f32 %v199, %v328
    %vm331 = vcmask 7168
    %v332 = vsel %vm331, %v329, 0.0
    %v333 = vsel %vm331, %v330, 0.0
    %v334 = vadd.f32 %v332, %v333
    %335 = vadd.xlane.f32.xlu0 %v334
    %v336 = vpop.xlane.xlu0 %335
    %v337 = vrot.slane %v336, 4
    %v338 = vadd.f32 %v336, %v337
    %v339 = vrot.slane %v338, 2
    %v340 = vadd.f32 %v338, %v339
    %v341 = vrot.slane %v340, 1
    %v342 = vadd.f32 %v340, %v341
    %s343 = vtos %v342
    %v344 = vstv %s343
    %345 = vst [vmem:[#allocation2] sm:$0xff] %v344
    // Predicated region
    $region58: #{tpu_custom_call.1} parent=1 // pred_check
      _
    $region59: #{tpu_custom_call.1} parent=1 // pred_check_branch
      %347 = sbr.rel (0) target = $region61
    $region60: #{tpu_custom_call.1} parent=1 // pred_region
      %s349 = ssub.s32 128, 128
      %350 = vsyncadd [#allocation3], %s349
      %s352 = sshll.u32 [#allocation2], 4
      %s353 = int_to_ptr.vmem [resolvable:$true] %s352
      %355 = dma.vmem_to_hbm [thread:$0]  %s353, 128, %s14, [#allocation3]
    $region61: #{tpu_custom_call.1} parent=1 // pred_fallthru
      _
    // Predicated region
    $region62: #{tpu_custom_call.1} parent=1 // pred_check
      _
    $region63: #{tpu_custom_call.1} parent=1 // pred_check_branch
      %357 = sbr.rel (0) target = $region65
    $region64: #{tpu_custom_call.1} parent=1 // pred_region
      %358 = dma.done [#allocation3], 128
    $region65: #{tpu_custom_call.1} parent=1 // pred_fallthru
      _
    %359 = vsyncpa [#allocation3], 1

</llo_original>
